<compile_context>
chip_gen: v7x
topology: tpu7x:2x2x1
jax: 0.10.0
libtpu: 0.0.40
codegen_flags: <defaults>
</compile_context>

<pallas_src>
import functools
import math

import jax
import jax.numpy as jnp
from jax.experimental import pallas as pl
from jax.experimental.pallas import tpu as pltpu

N_HIDDEN = 64                    # PyTorch module constant
_LANES = 128                     # folded output width = 2 tokens x 64 hidden
_VMEM_BUDGET_BYTES = 24 << 20    # double-buffered, lane-padded stream blocks
_VMEM_LIMIT_BYTES = 32 << 20     # scoped-VMEM limit (safe on v5e/v6e/v7x)


def _round_up(x, m):
    return ((x + m - 1) // m) * m


def _is_multi_tensorcore():
    # v7x has 2 TensorCores per chip; v5e/v6e have 1.
    try:
        kind = jax.devices()[0].device_kind.lower()
    except Exception:
        return False
    return ("v7" in kind) or ("7x" in kind)


_MULTI_TC = None  # resolved lazily on first call


def _make_kernel(n_parts):
    def kernel(*refs):
        # refs: x_0..x_{n-1}, w_0..w_{n-1}, b, o
        x_refs = refs[:n_parts]
        w_refs = refs[n_parts:2 * n_parts]
        b_ref = refs[2 * n_parts]
        o_ref = refs[2 * n_parts + 1]
        y = jnp.dot(x_refs[0][...], w_refs[0][...],
                    preferred_element_type=jnp.float32)
        for p in range(1, n_parts):
            y = y + jnp.dot(x_refs[p][...], w_refs[p][...],
                            preferred_element_type=jnp.float32)
        o_ref[...] = jnp.tanh(y + b_ref[...]).astype(o_ref.dtype)
    return kernel


def _block_diag2(w):
    # w: (F_i, 64) -> block_diag(w, w): (2*F_i, 128)
    f, n = w.shape
    z = jnp.zeros((f, n), dtype=w.dtype)
    top = jnp.concatenate([w, z], axis=1)
    bot = jnp.concatenate([z, w], axis=1)
    return jnp.concatenate([top, bot], axis=0)


@functools.partial(jax.jit,
                   static_argnames=("tile_rows", "core_parallel", "out_dtype"))
def _mlp_featurize(obs, weight, bias, *, tile_rows, core_parallel, out_dtype):
    n_batch, n_time = obs[0].shape[:2]
    m = n_batch * n_time

    # Flatten each part to (M, F_i) -- free row-major reshapes.
    parts = [jnp.asarray(o, jnp.float32).reshape(m, -1) for o in obs]
    f_sizes = [p.shape[1] for p in parts]
    n_features = sum(f_sizes)
    assert weight.shape == (N_HIDDEN, n_features)

    # Pair-fold tokens -> lane-dense (., 128) output.  Pad a single token only
    # when M is odd (zero row -> tanh(b): finite; sliced off afterwards).
    m_tokens = _round_up(max(m, 2), 2)
    if m_tokens != m:
        parts = [jnp.pad(p, ((0, m_tokens - m), (0, 0))) for p in parts]
    m_pairs = m_tokens // 2
    x_parts = [p.reshape(m_pairs, 2 * f_i) for p, f_i in zip(parts, f_sizes)]

    # Tile sizing: in VMEM each narrow x-block is padded to 128 lanes, so
    # budget with 128-lane columns per part plus the output, double-buffered.
    bytes_per_pair_row = 4 * (sum(_round_up(2 * f_i, _LANES) for f_i in f_sizes)
                              + _LANES)
    if tile_rows is None:
        tile_rows = max(8, (_VMEM_BUDGET_BYTES // (2 * bytes_per_pair_row)) // 8 * 8)
    tm = min(_round_up(tile_rows, 8), _round_up(m_pairs, 8))
    if core_parallel and m_pairs >= 16:
        # Keep >=2 grid steps so both v7x TensorCores get balanced work.
        tm = min(tm, _round_up(pl.cdiv(m_pairs, 2), 8))
    grid = (pl.cdiv(m_pairs, tm),)

    # Per-part weight slices, transposed to (F_i, 64), block-diag'd so a single
    # dot handles both folded tokens.  These stay VMEM-resident.
    w_t = jnp.asarray(weight, jnp.float32).T          # (F, 64)
    w_parts, start = [], 0
    for f_i in f_sizes:
        w_parts.append(_block_diag2(w_t[start:start + f_i]))
        start += f_i
    b2 = jnp.concatenate([jnp.asarray(bias, jnp.float32)] * 2).reshape(1, _LANES)

    in_specs = (
        [pl.BlockSpec((tm, 2 * f_i), lambda i: (i, 0)) for f_i in f_sizes]
        + [pl.BlockSpec((2 * f_i, _LANES), lambda i: (0, 0)) for f_i in f_sizes]
        + [pl.BlockSpec((1, _LANES), lambda i: (0, 0))]
    )
    semantics = (pltpu.CORE_PARALLEL,) if core_parallel else (pltpu.PARALLEL,)

    out = pl.pallas_call(
        _make_kernel(len(parts)),
        out_shape=jax.ShapeDtypeStruct((m_pairs, _LANES), out_dtype),
        grid=grid,
        in_specs=in_specs,
        out_specs=pl.BlockSpec((tm, _LANES), lambda i: (i, 0)),
        compiler_params=pltpu.CompilerParams(
            dimension_semantics=semantics,
            vmem_limit_bytes=_VMEM_LIMIT_BYTES,
        ),
    )(*x_parts, *w_parts, b2)

    # (m_pairs, 128) is row-major identical to (m_tokens, 64); free reshapes.
    out = out.reshape(m_tokens, N_HIDDEN)
    if m_tokens != m:            # only when M was odd
        out = out[:m]
    return out.reshape(n_batch, n_time, N_HIDDEN)


def mlp_featurize(obs, weight, bias, *, tile_rows=None, core_parallel=None,
                  out_dtype=jnp.float32):
    """obs: list of (B, T, *shape_i); weight: (64, F); bias: (64,) -> (B, T, 64)."""
    global _MULTI_TC
    if core_parallel is None:
        if _MULTI_TC is None:
            _MULTI_TC = _is_multi_tensorcore()
        core_parallel = _MULTI_TC
    return _mlp_featurize(tuple(obs), weight, bias, tile_rows=tile_rows,
                          core_parallel=core_parallel, out_dtype=out_dtype)


def init_params(key, n_features):
    """Deterministic init matching nn.Linear's default U(-1/sqrt(F), 1/sqrt(F))."""
    kw, kb = jax.random.split(key)
    bound = 1.0 / math.sqrt(n_features)
    weight = jax.random.uniform(
        kw, (N_HIDDEN, n_features), minval=-bound, maxval=bound, dtype=jnp.float32
    )
    bias = jax.random.uniform(
        kb, (N_HIDDEN,), minval=-bound, maxval=bound, dtype=jnp.float32
    )
    return weight, bias


if __name__ == "__main__":
    key = jax.random.PRNGKey(0)
    k_obs0, k_obs1, k_params = jax.random.split(key, 3)

    # feature_shape = [(4, 4), (8,)]  ->  n_features = 16 + 8 = 24
    batch, time = 2, 8
    obs = [
        jax.random.normal(k_obs0, (batch, time, 4, 4), dtype=jnp.float32),
        jax.random.normal(k_obs1, (batch, time, 8), dtype=jnp.float32),
    ]
    n_features = 4 * 4 + 8
    weight, bias = init_params(k_params, n_features)

    out = jax.block_until_ready(mlp_featurize(obs, weight, bias))

    feats = jnp.concatenate([o.reshape(batch, time, -1) for o in obs], axis=2)
    ref = jnp.tanh(feats @ weight.T + bias)
    assert out.shape == (batch, time, N_HIDDEN)
    assert jnp.allclose(out, ref, atol=1e-5, rtol=1e-5)

    # Second check: odd M (single-token pad), multi-step grid, ragged last
    # block handled by Pallas masked stores (no wrapper full-array pad/slice).
    kb0, kb1 = jax.random.split(jax.random.PRNGKey(1))
    batch2, time2 = 3, 17                                  # M = 51 (odd), m_pairs = 26
    obs2 = [
        jax.random.normal(kb0, (batch2, time2, 4, 4), dtype=jnp.float32),
        jax.random.normal(kb1, (batch2, time2, 8), dtype=jnp.float32),
    ]
    out2 = jax.block_until_ready(mlp_featurize(obs2, weight, bias, tile_rows=8))
    feats2 = jnp.concatenate([o.reshape(batch2, time2, -1) for o in obs2], axis=2)
    ref2 = jnp.tanh(feats2 @ weight.T + bias)
    assert out2.shape == (batch2, time2, N_HIDDEN)
    assert jnp.allclose(out2, ref2, atol=1e-5, rtol=1e-5)

    print("KERNEL_OK")
</pallas_src>

<mosaic_0001>
module attributes {stable_mosaic.version = 11 : i64} {
  func.func @kernel(%arg0: i32, %arg1: memref<8x32xf32, #tpu.memory_space<vmem>>, %arg2: memref<8x16xf32, #tpu.memory_space<vmem>>, %arg3: memref<32x128xf32, #tpu.memory_space<vmem>>, %arg4: memref<16x128xf32, #tpu.memory_space<vmem>>, %arg5: memref<1x128xf32, #tpu.memory_space<vmem>>, %arg6: memref<8x128xf32, #tpu.memory_space<vmem>>) attributes {dimension_semantics = [#tpu.dimension_semantics<parallel>], iteration_bounds = array<i64: 1>, scalar_prefetch = 0 : i64, scratch_operands = 0 : i64, tpu.core_type = #tpu.core_type<tc>, window_params = [{transform_indices = @transform_0, window_bounds = array<i64: 8, 32>}, {transform_indices = @transform_1, window_bounds = array<i64: 8, 16>}, {pipeline_mode = #tpu.pipeline_mode<synchronous>, transform_indices = @transform_2, window_bounds = array<i64: 32, 128>}, {pipeline_mode = #tpu.pipeline_mode<synchronous>, transform_indices = @transform_3, window_bounds = array<i64: 16, 128>}, {pipeline_mode = #tpu.pipeline_mode<synchronous>, transform_indices = @transform_4, window_bounds = array<i64: 1, 128>}, {transform_indices = @transform_5, window_bounds = array<i64: 8, 128>}]} {
    %c0 = arith.constant 0 : index
    %c0_0 = arith.constant 0 : index
    %0 = vector.load %arg1[%c0, %c0_0] : memref<8x32xf32, #tpu.memory_space<vmem>>, vector<8x32xf32>
    %c0_1 = arith.constant 0 : index
    %c0_2 = arith.constant 0 : index
    %1 = vector.load %arg3[%c0_1, %c0_2] : memref<32x128xf32, #tpu.memory_space<vmem>>, vector<32x128xf32>
    %cst = arith.constant dense<0.000000e+00> : vector<8x128xf32>
    %2 = tpu.matmul %0, %1, %cst {dimension_numbers = #tpu.dot_dimension_numbers<[1], [0], [0], [1], [0, 0, 1, 1], [], []>} : vector<8x32xf32>, vector<32x128xf32>, vector<8x128xf32> -> vector<8x128xf32>
    %c0_3 = arith.constant 0 : index
    %c0_4 = arith.constant 0 : index
    %3 = vector.load %arg2[%c0_3, %c0_4] : memref<8x16xf32, #tpu.memory_space<vmem>>, vector<8x16xf32>
    %c0_5 = arith.constant 0 : index
    %c0_6 = arith.constant 0 : index
    %4 = vector.load %arg4[%c0_5, %c0_6] : memref<16x128xf32, #tpu.memory_space<vmem>>, vector<16x128xf32>
    %cst_7 = arith.constant dense<0.000000e+00> : vector<8x128xf32>
    %5 = tpu.matmul %3, %4, %cst_7 {dimension_numbers = #tpu.dot_dimension_numbers<[1], [0], [0], [1], [0, 0, 1, 1], [], []>} : vector<8x16xf32>, vector<16x128xf32>, vector<8x128xf32> -> vector<8x128xf32>
    %6 = arith.addf %2, %5 : vector<8x128xf32>
    %c0_8 = arith.constant 0 : index
    %c0_9 = arith.constant 0 : index
    %7 = vector.load %arg5[%c0_8, %c0_9] : memref<1x128xf32, #tpu.memory_space<vmem>>, vector<1x128xf32>
    %8 = vector.broadcast %7 : vector<1x128xf32> to vector<8x128xf32>
    %9 = arith.addf %6, %8 : vector<8x128xf32>
    %10 = math.tanh %9 : vector<8x128xf32>
    %c0_10 = arith.constant 0 : index
    %c0_11 = arith.constant 0 : index
    %11 = vector.load %arg6[%c0_10, %c0_11] : memref<8x128xf32, #tpu.memory_space<vmem>>, vector<8x128xf32>
    tpu.vector_store %arg6[%c0_10, %c0_11], %10 {strides = array<i32>} : memref<8x128xf32, #tpu.memory_space<vmem>>, vector<8x128xf32>,
    return
  }
  func.func @transform_0(%arg0: i32) -> (i32, i32) {
    %c0_i32 = arith.constant 0 : i32
    %c0_i32_0 = arith.constant 0 : i32
    return %arg0, %c0_i32 : i32, i32
  }
  func.func @transform_1(%arg0: i32) -> (i32, i32) {
    %c0_i32 = arith.constant 0 : i32
    %c0_i32_0 = arith.constant 0 : i32
    return %arg0, %c0_i32 : i32, i32
  }
  func.func @transform_2(%arg0: i32) -> (i32, i32) {
    %c0_i32 = arith.constant 0 : i32
    %c0_i32_0 = arith.constant 0 : i32
    %c0_i32_1 = arith.constant 0 : i32
    return %c0_i32, %c0_i32_0 : i32, i32
  }
  func.func @transform_3(%arg0: i32) -> (i32, i32) {
    %c0_i32 = arith.constant 0 : i32
    %c0_i32_0 = arith.constant 0 : i32
    %c0_i32_1 = arith.constant 0 : i32
    return %c0_i32, %c0_i32_0 : i32, i32
  }
  func.func @transform_4(%arg0: i32) -> (i32, i32) {
    %c0_i32 = arith.constant 0 : i32
    %c0_i32_0 = arith.constant 0 : i32
    %c0_i32_1 = arith.constant 0 : i32
    return %c0_i32, %c0_i32_0 : i32, i32
  }
  func.func @transform_5(%arg0: i32) -> (i32, i32) {
    %c0_i32 = arith.constant 0 : i32
    %c0_i32_0 = arith.constant 0 : i32
    return %arg0, %c0_i32 : i32, i32
  }
}

</mosaic_0001>

<llo_original>
// kernel: _mlp_featurize.1
$region0: #{_mlp_featurize.1}
  #allocation0 [shape = 'u32[]', space=smem, size = 0x4, offset = 0x4, fixed_abs, tag = 'smem constant byte address 0x4 - core index']
  #allocation1 [shape = 'u32[144,128]{1,0:T(1,128)}', space=vmem, size = 0x12000, scoped, tag = 'internal scratch']
  %s0 = inlined_call_operand.vmem [shape: f32[8,32], index: 0, kind: input, shape index: {}]
  %s1 = inlined_call_operand.vmem [shape: f32[8,16], index: 1, kind: input, shape index: {}]
  %s2 = inlined_call_operand.vmem [shape: f32[32,128], index: 2, kind: input, shape index: {}]
  %s3 = inlined_call_operand.vmem [shape: f32[16,128], index: 3, kind: input, shape index: {}]
  %s4 = inlined_call_operand.vmem [shape: f32[1,128], index: 4, kind: input, shape index: {}]
  %s5 = inlined_call_operand.vmem [shape: f32[8,128], index: 5, kind: output, shape index: {}]
  %s6 = sld [smem:[#allocation0]]
  $region30: #{_mlp_featurize.1} parent=0
    _
  %s8 = ssub.s32 1, %s6
  %s9 = scalar_select 0, %s8, %s6
  // Predicated region
  $region2: #{_mlp_featurize.1} parent=0 // pred_check
    _
  $region3: #{_mlp_featurize.1} parent=0 // pred_check_branch
    %11 = sbr.rel (0) target = $region5
  $region4: #{_mlp_featurize.1} parent=0 // pred_region
    _
  $region5: #{_mlp_featurize.1} parent=0 // pred_fallthru
    _
  // Predicated region
  $region6: #{_mlp_featurize.1} parent=0 // pred_check
    _
  $region7: #{_mlp_featurize.1} parent=0 // pred_check_branch
    %13 = sbr.rel (0) target = $region9
  $region8: #{_mlp_featurize.1} parent=0 // pred_region
    _
  $region9: #{_mlp_featurize.1} parent=0 // pred_fallthru
    _
  // Predicated region
  $region10: #{_mlp_featurize.1} parent=0 // pred_check
    _
  $region11: #{_mlp_featurize.1} parent=0 // pred_check_branch
    %15 = sbr.rel (0) target = $region13
  $region12: #{_mlp_featurize.1} parent=0 // pred_region
    _
  $region13: #{_mlp_featurize.1} parent=0 // pred_fallthru
    _
  // Predicated region
  $region14: #{_mlp_featurize.1} parent=0 // pred_check
    _
  $region15: #{_mlp_featurize.1} parent=0 // pred_check_branch
    %17 = sbr.rel (0) target = $region17
  $region16: #{_mlp_featurize.1} parent=0 // pred_region
    _
  $region17: #{_mlp_featurize.1} parent=0 // pred_fallthru
    _
  // Predicated region
  $region18: #{_mlp_featurize.1} parent=0 // pred_check
    _
  $region19: #{_mlp_featurize.1} parent=0 // pred_check_branch
    %19 = sbr.rel (0) target = $region21
  $region20: #{_mlp_featurize.1} parent=0 // pred_region
    _
  $region21: #{_mlp_featurize.1} parent=0 // pred_fallthru
    _
  %v20 = vld [vmem:[%s0] sm:$0xff]
  %v21 = vld [vmem:[%s2] sm:$0xff]
  %v22 = vld [vmem:[%s2 + $0x8] sm:$0xff]
  %v23 = vld [vmem:[%s2 + $0x10] sm:$0xff]
  %v24 = vld [vmem:[%s2 + $0x18] sm:$0xff]
  %v25 = vld [vmem:[%s1] sm:$0xff]
  %v26 = vld [vmem:[%s3] sm:$0xff]
  %v27 = vld [vmem:[%s3 + $0x8] sm:$0xff]
  %vm28 = vcmask 130048
  %v30 = vsel %vm28, %v25, 0
  %32 = vmatprep.subr.mxu0 0.0
  %33 = vmatpush1.msra.mxu0 %v26
  %34 = vmatprep.subr.mxu0 0.0
  %35 = vmatpush1.msra.mxu0 %v27
  %36 = vmatprep.subr.mxu0 0.0
  %37 = vmatpush1.msra.mxu0 0.0
  %38 = vmatprep.subr.mxu0 0.0
  %39 = vmatpush1.msra.mxu0 0.0
  %40 = vmatprep.subr.mxu0 0.0
  %41 = vmatpush1.msra.mxu0 0.0
  %42 = vmatprep.subr.mxu0 0.0
  %43 = vmatpush1.msra.mxu0 0.0
  %44 = vmatprep.subr.mxu0 0.0
  %45 = vmatpush1.msra.mxu0 0.0
  %46 = vmatprep.subr.mxu0 0.0
  %47 = vmatpush1.msra.mxu0 0.0
  %48 = vmatprep.subr.mxu0 0.0
  %49 = vmatpush1.msra.mxu0 0.0
  %50 = vmatprep.subr.mxu0 0.0
  %51 = vmatpush1.msra.mxu0 0.0
  %52 = vmatprep.subr.mxu0 0.0
  %53 = vmatpush1.msra.mxu0 0.0
  %54 = vmatprep.subr.mxu0 0.0
  %55 = vmatpush1.msra.mxu0 0.0
  %56 = vmatprep.subr.mxu0 0.0
  %57 = vmatpush1.msra.mxu0 0.0
  %58 = vmatprep.subr.mxu0 0.0
  %59 = vmatpush1.msra.mxu0 0.0
  %60 = vmatprep.subr.mxu0 0.0
  %61 = vmatpush1.msra.mxu0 0.0
  %62 = vmatprep.subr.mxu0 0.0
  %63 = vmatpush1.msra.mxu0 0.0
  %64 = vmatprep.subr.mxu0 0.0
  %65 = vmatpush1.msra.mxu0 0.0
  %66 = vmatprep.subr.mxu0 0.0
  %67 = vmatpush1.msra.mxu0 0.0
  %68 = vmatprep.subr.mxu0 0.0
  %69 = vmatpush1.msra.mxu0 0.0
  %70 = vmatprep.subr.mxu0 0.0
  %71 = vmatpush1.msra.mxu0 0.0
  %72 = vmatprep.subr.mxu0 0.0
  %73 = vmatpush1.msra.mxu0 0.0
  %74 = vmatprep.subr.mxu0 0.0
  %75 = vmatpush1.msra.mxu0 0.0
  %76 = vmatprep.subr.mxu0 0.0
  %77 = vmatpush1.msra.mxu0 0.0
  %78 = vmatprep.subr.mxu0 0.0
  %79 = vmatpush1.msra.mxu0 0.0
  %80 = vmatprep.subr.mxu0 0.0
  %81 = vmatpush1.msra.mxu0 0.0
  %82 = vmatprep.subr.mxu0 0.0
  %83 = vmatpush1.msra.mxu0 0.0
  %84 = vmatprep.subr.mxu0 0.0
  %85 = vmatpush1.msra.mxu0 0.0
  %86 = vmatprep.subr.mxu0 0.0
  %87 = vmatpush1.msra.mxu0 0.0
  %88 = vmatprep.subr.mxu0 0.0
  %89 = vmatpush1.msra.mxu0 0.0
  %90 = vmatprep.subr.mxu0 0.0
  %91 = vmatpush1.msra.mxu0 0.0
  %92 = vmatprep.subr.mxu0 0.0
  %93 = vmatpush1.msra.mxu0 0.0
  %94 = vmatprep.subr.mxu0 0.0
  %95 = vmatpush1.msra.mxu0 0.0
  %96 = vmatprep.mubr.f32.mxu0 0.0
  %97 = vmatmul.mubr.f32.gmra.mrb[0].mxu0 %v30
  %v98 = vpop.f32.mrb[0].mxu0
  %v99 = vadd.f32 0.0, %v98
  %v100 = vpop.f32.mrb[0].mxu0
  %101 = vdwg.mxu0
  %vm102 = vcmask 261120
  %v104 = vsel %vm102, %v20, 0
  %106 = vmatprep.subr.mxu0 0.0
  %107 = vmatpush1.msra.mxu0 %v21
  %108 = vmatprep.subr.mxu0 0.0
  %109 = vmatpush1.msra.mxu0 %v22
  %110 = vmatprep.subr.mxu0 0.0
  %111 = vmatpush1.msra.mxu0 %v23
  %112 = vmatprep.subr.mxu0 0.0
  %113 = vmatpush1.msra.mxu0 %v24
  %114 = vmatprep.subr.mxu0 0.0
  %115 = vmatpush1.msra.mxu0 0.0
  %116 = vmatprep.subr.mxu0 0.0
  %117 = vmatpush1.msra.mxu0 0.0
  %118 = vmatprep.subr.mxu0 0.0
  %119 = vmatpush1.msra.mxu0 0.0
  %120 = vmatprep.subr.mxu0 0.0
  %121 = vmatpush1.msra.mxu0 0.0
  %122 = vmatprep.subr.mxu0 0.0
  %123 = vmatpush1.msra.mxu0 0.0
  %124 = vmatprep.subr.mxu0 0.0
  %125 = vmatpush1.msra.mxu0 0.0
  %126 = vmatprep.subr.mxu0 0.0
  %127 = vmatpush1.msra.mxu0 0.0
  %128 = vmatprep.subr.mxu0 0.0
  %129 = vmatpush1.msra.mxu0 0.0
  %130 = vmatprep.subr.mxu0 0.0
  %131 = vmatpush1.msra.mxu0 0.0
  %132 = vmatprep.subr.mxu0 0.0
  %133 = vmatpush1.msra.mxu0 0.0
  %134 = vmatprep.subr.mxu0 0.0
  %135 = vmatpush1.msra.mxu0 0.0
  %136 = vmatprep.subr.mxu0 0.0
  %137 = vmatpush1.msra.mxu0 0.0
  %138 = vmatprep.subr.mxu0 0.0
  %139 = vmatpush1.msra.mxu0 0.0
  %140 = vmatprep.subr.mxu0 0.0
  %141 = vmatpush1.msra.mxu0 0.0
  %142 = vmatprep.subr.mxu0 0.0
  %143 = vmatpush1.msra.mxu0 0.0
  %144 = vmatprep.subr.mxu0 0.0
  %145 = vmatpush1.msra.mxu0 0.0
  %146 = vmatprep.subr.mxu0 0.0
  %147 = vmatpush1.msra.mxu0 0.0
  %148 = vmatprep.subr.mxu0 0.0
  %149 = vmatpush1.msra.mxu0 0.0
  %150 = vmatprep.subr.mxu0 0.0
  %151 = vmatpush1.msra.mxu0 0.0
  %152 = vmatprep.subr.mxu0 0.0
  %153 = vmatpush1.msra.mxu0 0.0
  %154 = vmatprep.subr.mxu0 0.0
  %155 = vmatpush1.msra.mxu0 0.0
  %156 = vmatprep.subr.mxu0 0.0
  %157 = vmatpush1.msra.mxu0 0.0
  %158 = vmatprep.subr.mxu0 0.0
  %159 = vmatpush1.msra.mxu0 0.0
  %160 = vmatprep.subr.mxu0 0.0
  %161 = vmatpush1.msra.mxu0 0.0
  %162 = vmatprep.subr.mxu0 0.0
  %163 = vmatpush1.msra.mxu0 0.0
  %164 = vmatprep.subr.mxu0 0.0
  %165 = vmatpush1.msra.mxu0 0.0
  %166 = vmatprep.subr.mxu0 0.0
  %167 = vmatpush1.msra.mxu0 0.0
  %168 = vmatprep.subr.mxu0 0.0
  %169 = vmatpush1.msra.mxu0 0.0
  %170 = vmatprep.mubr.f32.mxu0 0.0
  %171 = vmatmul.mubr.f32.gmra.mrb[0].mxu0 %v104
  %v172 = vpop.f32.mrb[0].mxu0
  %v173 = vadd.f32 %v99, %v172
  %v174 = vpop.f32.mrb[0].mxu0
  %175 = vdwg.mxu0
  %v176 = vld [vmem:[%s4] sm:$0x1]
  %v178 = vlaneseq
  %v179 = vshrl.u32 %v178, 7
  %v180 = vsub.s32 0, %v179
  %v181 = vrot.slane %v176, %v180
  %v183 = vadd.f32 %v173, %v181
  %v184 = vtanh.pop %v183
  %185 = vst [vmem:[%s5] sm:$0xff] %v184
  // Predicated region
  $region22: #{_mlp_featurize.1} parent=0 // pred_check
    _
  $region23: #{_mlp_featurize.1} parent=0 // pred_check_branch
    %187 = sbr.rel (0) target = $region25
  $region24: #{_mlp_featurize.1} parent=0 // pred_region
    _
  $region25: #{_mlp_featurize.1} parent=0 // pred_fallthru
    _
  // Predicated region
  $region26: #{_mlp_featurize.1} parent=0 // pred_check
    _
  $region27: #{_mlp_featurize.1} parent=0 // pred_check_branch
    %189 = sbr.rel (0) target = $region29
  $region28: #{_mlp_featurize.1} parent=0 // pred_region
    _
  $region29: #{_mlp_featurize.1} parent=0 // pred_fallthru
    _

</llo_original>
